<compile_context>
chip_gen: v6e
topology: v6e:2x2x1
jax: 0.10.0
libtpu: 0.0.40
codegen_flags: <defaults>
</compile_context>

<pallas_src>
import functools

import jax
import jax.numpy as jnp
from jax.experimental import pallas as pl
from jax.experimental.pallas import tpu as pltpu

_LANE = 128
_MIN_TC_SPLIT = 1024  # only force grid >= 2 when per-core work is substantial


def _round_up(x, m):
    return ((x + m - 1) // m) * m


def _classifier_head_kernel(x_ref, w1_ref, b1_ref, w2_ref, b2_ref,
                            w3_ref, b3_ref, o_ref):
    cdt = w1_ref.dtype  # compute dtype of the matmul operands (bf16 or f32)

    # hidden1 -> (dropout=id) -> relu.  x arrives at its native dtype and is
    # cast to the compute dtype here (no extra HBM pass in the wrapper); the
    # MXU accumulates in f32 via preferred_element_type.
    h1 = jnp.dot(x_ref[...].astype(cdt), w1_ref[...],
                 preferred_element_type=jnp.float32) + b1_ref[...]
    h1 = jnp.maximum(h1, 0.0).astype(cdt)       # cast right after ReLU

    # hidden2 -> (dropout=id) -> relu
    h2 = jnp.dot(h1, w2_ref[...],
                 preferred_element_type=jnp.float32) + b2_ref[...]
    h2 = jnp.maximum(h2, 0.0).astype(cdt)

    # output linear (no activation); bias added in f32, stored at out dtype.
    out = jnp.dot(h2, w3_ref[...],
                  preferred_element_type=jnp.float32) + b3_ref[...]
    o_ref[...] = out.astype(o_ref.dtype)


@functools.partial(jax.jit, static_argnames=("batch_tile", "compute_dtype"))
def classifier_head(x, w1, b1, w2, b2, w3, b3, *, batch_tile=2048,
                    compute_dtype=jnp.bfloat16):
    """Fused MLP head.  x: (B, in_dim); returns (B, num_labels) float32."""
    B, in_dim = x.shape
    h1_dim = w1.shape[1]
    h2_dim = w2.shape[1]
    n_labels = w3.shape[1]

    # Effective batch tile: multiple of 8 (sublane rule), no larger than the
    # rounded-up batch.  No jnp.pad copy: the ragged tail block's OOB output
    # rows are masked by Pallas on write-back.
    tile = max(8, min(batch_tile, _round_up(B, 8)))
    # For large batches keep the grid >= 2 so the "parallel" batch axis can
    # shard across both TensorCores on v7x (no-op for small B).
    if B >= 2 * _MIN_TC_SPLIT:
        tile = min(tile, _round_up((B + 1) // 2, 8))
    grid = (pl.cdiv(B, tile),)

    # Weights are tiny and grid-resident: pre-cast them to the compute dtype.
    # x is NOT cast here (the standalone convert would add a full extra HBM
    # read+write pass over the dominant operand); it is cast in-kernel.
    w1c = w1.astype(compute_dtype)
    w2c = w2.astype(compute_dtype)
    w3c = w3.astype(compute_dtype)

    # Biases as (1, dim) 2-D f32 rows (TPU-friendly; broadcast inside kernel).
    b1r = b1.reshape(1, h1_dim).astype(jnp.float32)
    b2r = b2.reshape(1, h2_dim).astype(jnp.float32)
    b3r = b3.reshape(1, n_labels).astype(jnp.float32)

    # Per-step VMEM budget (lane-padded widths, double-buffered I/O) so the
    # scoped VMEM limit is explicit; capped below v7x's 64 MiB physical VMEM.
    pad = lambda d: _round_up(d, _LANE)
    x_bytes = x.dtype.itemsize
    est = 2 * tile * pad(in_dim) * x_bytes          # x, double-buffered
    est += 2 * tile * pad(n_labels) * 4             # f32 output, double-buffered
    est += tile * (pad(h1_dim) + pad(h2_dim)) * 8   # intermediates (f32 + cdt)
    est += 4 << 20                                  # weights/biases + headroom
    vmem_limit = int(min(max(est, 32 << 20), 48 << 20))

    full = lambda i: (0, 0)  # weights/biases: same block every step -> no re-DMA

    out = pl.pallas_call(
        _classifier_head_kernel,
        out_shape=jax.ShapeDtypeStruct((B, n_labels), jnp.float32),
        grid_spec=pltpu.PrefetchScalarGridSpec(
            num_scalar_prefetch=0,
            grid=grid,
            in_specs=[
                pl.BlockSpec((tile, in_dim), lambda i: (i, 0)),  # x tile
                pl.BlockSpec((in_dim, h1_dim), full),            # w1
                pl.BlockSpec((1, h1_dim), full),                 # b1
                pl.BlockSpec((h1_dim, h2_dim), full),            # w2
                pl.BlockSpec((1, h2_dim), full),                 # b2
                pl.BlockSpec((h2_dim, n_labels), full),          # w3
                pl.BlockSpec((1, n_labels), full),               # b3
            ],
            out_specs=pl.BlockSpec((tile, n_labels), lambda i: (i, 0)),
        ),
        compiler_params=pltpu.CompilerParams(
            dimension_semantics=("parallel",),
            vmem_limit_bytes=vmem_limit),
    )(x, w1c, b1r, w2c, b2r, w3c, b3r)

    return out


def _reference(x, w1, b1, w2, b2, w3, b3):
    h = jax.nn.relu(x @ w1 + b1)
    h = jax.nn.relu(h @ w2 + b2)
    return h @ w3 + b3


if __name__ == "__main__":
    # config: embedding_dim=32, hidden1_dim=64, hidden2_dim=32, num_labels=2
    embedding_dim = 32
    in_dim = 2 * embedding_dim + 1          # 65
    h1_dim, h2_dim, n_labels = 64, 32, 2
    batch = 10                               # deliberately NOT a multiple of 8

    key = jax.random.PRNGKey(0)
    kx, k1, k2, k3, kb1, kb2, kb3 = jax.random.split(key, 7)

    x = jax.random.normal(kx, (batch, in_dim), dtype=jnp.float32)

    # Deterministic parameter init (stored as (in, out) == PyTorch W.T).
    w1 = jax.random.normal(k1, (in_dim, h1_dim), dtype=jnp.float32) * 0.1
    b1 = jax.random.normal(kb1, (h1_dim,), dtype=jnp.float32) * 0.1
    w2 = jax.random.normal(k2, (h1_dim, h2_dim), dtype=jnp.float32) * 0.1
    b2 = jax.random.normal(kb2, (h2_dim,), dtype=jnp.float32) * 0.1
    w3 = jax.random.normal(k3, (h2_dim, n_labels), dtype=jnp.float32) * 0.1
    b3 = jax.random.normal(kb3, (n_labels,), dtype=jnp.float32) * 0.1

    ref = _reference(x, w1, b1, w2, b2, w3, b3)

    # 1) Exact-math check: f32 compute path, single (ragged) grid step.
    out_f32 = classifier_head(x, w1, b1, w2, b2, w3, b3,
                              compute_dtype=jnp.float32)
    out_f32 = jax.block_until_ready(out_f32)
    assert out_f32.shape == (batch, n_labels), out_f32.shape
    assert jnp.allclose(out_f32, ref, atol=1e-5, rtol=1e-5), \
        float(jnp.max(jnp.abs(out_f32 - ref)))

    # 2) Default bf16-compute path (in-kernel cast of f32 x).
    out_bf16 = classifier_head(x, w1, b1, w2, b2, w3, b3)
    out_bf16 = jax.block_until_ready(out_bf16)
    assert out_bf16.shape == (batch, n_labels), out_bf16.shape
    assert jnp.allclose(out_bf16, ref, atol=3e-2, rtol=3e-2), \
        float(jnp.max(jnp.abs(out_bf16 - ref)))

    # 3) Multi-step grid with a ragged tail block (tile=8 -> grid=2, tail
    #    block covers only 2 valid rows).
    out_multi = classifier_head(x, w1, b1, w2, b2, w3, b3, batch_tile=8)
    out_multi = jax.block_until_ready(out_multi)
    assert out_multi.shape == (batch, n_labels), out_multi.shape
    assert jnp.allclose(out_multi, ref, atol=3e-2, rtol=3e-2), \
        float(jnp.max(jnp.abs(out_multi - ref)))

    # 4) Slightly larger batch exercising grid > 2 with a ragged tail.
    xb = jax.random.normal(kx, (300, in_dim), dtype=jnp.float32)
    refb = _reference(xb, w1, b1, w2, b2, w3, b3)
    out_b = classifier_head(xb, w1, b1, w2, b2, w3, b3, batch_tile=128)
    out_b = jax.block_until_ready(out_b)
    assert out_b.shape == (300, n_labels), out_b.shape
    assert jnp.allclose(out_b, refb, atol=3e-2, rtol=3e-2), \
        float(jnp.max(jnp.abs(out_b - refb)))

    print("KERNEL_OK")
</pallas_src>

<mosaic_0001>
module attributes {stable_mosaic.version = 11 : i64} {
  func.func @_classifier_head_kernel(%arg0: i32, %arg1: memref<16x65xf32, #tpu.memory_space<vmem>>, %arg2: memref<65x64xf32, #tpu.memory_space<vmem>>, %arg3: memref<1x64xf32, #tpu.memory_space<vmem>>, %arg4: memref<64x32xf32, #tpu.memory_space<vmem>>, %arg5: memref<1x32xf32, #tpu.memory_space<vmem>>, %arg6: memref<32x2xf32, #tpu.memory_space<vmem>>, %arg7: memref<1x2xf32, #tpu.memory_space<vmem>>, %arg8: memref<16x2xf32, #tpu.memory_space<vmem>>) attributes {dimension_semantics = [#tpu.dimension_semantics<parallel>], iteration_bounds = array<i64: 1>, scalar_prefetch = 0 : i64, scratch_operands = 0 : i64, tpu.core_type = #tpu.core_type<tc>, window_params = [{transform_indices = @transform_0, window_bounds = array<i64: 16, 65>}, {pipeline_mode = #tpu.pipeline_mode<synchronous>, transform_indices = @transform_1, window_bounds = array<i64: 65, 64>}, {pipeline_mode = #tpu.pipeline_mode<synchronous>, transform_indices = @transform_2, window_bounds = array<i64: 1, 64>}, {pipeline_mode = #tpu.pipeline_mode<synchronous>, transform_indices = @transform_3, window_bounds = array<i64: 64, 32>}, {pipeline_mode = #tpu.pipeline_mode<synchronous>, transform_indices = @transform_4, window_bounds = array<i64: 1, 32>}, {pipeline_mode = #tpu.pipeline_mode<synchronous>, transform_indices = @transform_5, window_bounds = array<i64: 32, 2>}, {pipeline_mode = #tpu.pipeline_mode<synchronous>, transform_indices = @transform_6, window_bounds = array<i64: 1, 2>}, {transform_indices = @transform_7, window_bounds = array<i64: 16, 2>}]} {
    %c0 = arith.constant 0 : index
    %c0_0 = arith.constant 0 : index
    %0 = vector.load %arg1[%c0, %c0_0] : memref<16x65xf32, #tpu.memory_space<vmem>>, vector<16x65xf32>
    %c0_1 = arith.constant 0 : index
    %c0_2 = arith.constant 0 : index
    %1 = vector.load %arg2[%c0_1, %c0_2] : memref<65x64xf32, #tpu.memory_space<vmem>>, vector<65x64xf32>
    %cst = arith.constant dense<0.000000e+00> : vector<16x64xf32>
    %2 = tpu.matmul %0, %1, %cst {dimension_numbers = #tpu.dot_dimension_numbers<[1], [0], [0], [1], [0, 0, 1, 1], [], []>} : vector<16x65xf32>, vector<65x64xf32>, vector<16x64xf32> -> vector<16x64xf32>
    %c0_3 = arith.constant 0 : index
    %c0_4 = arith.constant 0 : index
    %3 = vector.load %arg3[%c0_3, %c0_4] : memref<1x64xf32, #tpu.memory_space<vmem>>, vector<1x64xf32>
    %4 = vector.broadcast %3 : vector<1x64xf32> to vector<16x64xf32>
    %5 = arith.addf %2, %4 : vector<16x64xf32>
    %cst_5 = arith.constant 0.000000e+00 : f32
    %6 = vector.broadcast %cst_5 : f32 to vector<16x64xf32>
    %7 = arith.maximumf %5, %6 : vector<16x64xf32>
    %c0_6 = arith.constant 0 : index
    %c0_7 = arith.constant 0 : index
    %8 = vector.load %arg4[%c0_6, %c0_7] : memref<64x32xf32, #tpu.memory_space<vmem>>, vector<64x32xf32>
    %cst_8 = arith.constant dense<0.000000e+00> : vector<16x32xf32>
    %9 = tpu.matmul %7, %8, %cst_8 {dimension_numbers = #tpu.dot_dimension_numbers<[1], [0], [0], [1], [0, 0, 1, 1], [], []>} : vector<16x64xf32>, vector<64x32xf32>, vector<16x32xf32> -> vector<16x32xf32>
    %c0_9 = arith.constant 0 : index
    %c0_10 = arith.constant 0 : index
    %10 = vector.load %arg5[%c0_9, %c0_10] : memref<1x32xf32, #tpu.memory_space<vmem>>, vector<1x32xf32>
    %11 = vector.broadcast %10 : vector<1x32xf32> to vector<16x32xf32>
    %12 = arith.addf %9, %11 : vector<16x32xf32>
    %cst_11 = arith.constant 0.000000e+00 : f32
    %13 = vector.broadcast %cst_11 : f32 to vector<16x32xf32>
    %14 = arith.maximumf %12, %13 : vector<16x32xf32>
    %c0_12 = arith.constant 0 : index
    %c0_13 = arith.constant 0 : index
    %15 = vector.load %arg6[%c0_12, %c0_13] : memref<32x2xf32, #tpu.memory_space<vmem>>, vector<32x2xf32>
    %cst_14 = arith.constant dense<0.000000e+00> : vector<16x2xf32>
    %16 = tpu.matmul %14, %15, %cst_14 {dimension_numbers = #tpu.dot_dimension_numbers<[1], [0], [0], [1], [0, 0, 1, 1], [], []>} : vector<16x32xf32>, vector<32x2xf32>, vector<16x2xf32> -> vector<16x2xf32>
    %c0_15 = arith.constant 0 : index
    %c0_16 = arith.constant 0 : index
    %17 = vector.load %arg7[%c0_15, %c0_16] : memref<1x2xf32, #tpu.memory_space<vmem>>, vector<1x2xf32>
    %18 = vector.broadcast %17 : vector<1x2xf32> to vector<16x2xf32>
    %19 = arith.addf %16, %18 : vector<16x2xf32>
    %c0_17 = arith.constant 0 : index
    %c0_18 = arith.constant 0 : index
    %20 = vector.load %arg8[%c0_17, %c0_18] : memref<16x2xf32, #tpu.memory_space<vmem>>, vector<16x2xf32>
    tpu.vector_store %arg8[%c0_17, %c0_18], %19 {strides = array<i32>} : memref<16x2xf32, #tpu.memory_space<vmem>>, vector<16x2xf32>,
    return
  }
  func.func @transform_0(%arg0: i32) -> (i32, i32) {
    %c0_i32 = arith.constant 0 : i32
    %c0_i32_0 = arith.constant 0 : i32
    return %arg0, %c0_i32 : i32, i32
  }
  func.func @transform_1(%arg0: i32) -> (i32, i32) {
    %c0_i32 = arith.constant 0 : i32
    %c0_i32_0 = arith.constant 0 : i32
    %c0_i32_1 = arith.constant 0 : i32
    return %c0_i32, %c0_i32_0 : i32, i32
  }
  func.func @transform_2(%arg0: i32) -> (i32, i32) {
    %c0_i32 = arith.constant 0 : i32
    %c0_i32_0 = arith.constant 0 : i32
    %c0_i32_1 = arith.constant 0 : i32
    return %c0_i32, %c0_i32_0 : i32, i32
  }
  func.func @transform_3(%arg0: i32) -> (i32, i32) {
    %c0_i32 = arith.constant 0 : i32
    %c0_i32_0 = arith.constant 0 : i32
    %c0_i32_1 = arith.constant 0 : i32
    return %c0_i32, %c0_i32_0 : i32, i32
  }
  func.func @transform_4(%arg0: i32) -> (i32, i32) {
    %c0_i32 = arith.constant 0 : i32
    %c0_i32_0 = arith.constant 0 : i32
    %c0_i32_1 = arith.constant 0 : i32
    return %c0_i32, %c0_i32_0 : i32, i32
  }
  func.func @transform_5(%arg0: i32) -> (i32, i32) {
    %c0_i32 = arith.constant 0 : i32
    %c0_i32_0 = arith.constant 0 : i32
    %c0_i32_1 = arith.constant 0 : i32
    return %c0_i32, %c0_i32_0 : i32, i32
  }
  func.func @transform_6(%arg0: i32) -> (i32, i32) {
    %c0_i32 = arith.constant 0 : i32
    %c0_i32_0 = arith.constant 0 : i32
    %c0_i32_1 = arith.constant 0 : i32
    return %c0_i32, %c0_i32_0 : i32, i32
  }
  func.func @transform_7(%arg0: i32) -> (i32, i32) {
    %c0_i32 = arith.constant 0 : i32
    %c0_i32_0 = arith.constant 0 : i32
    return %arg0, %c0_i32 : i32, i32
  }
}

</mosaic_0001>

<llo_original>
// kernel: classifier_head.1
$region0: #{classifier_head.1}
  #allocation0 [shape = 'u32[]', space=smem, size = 0x4, offset = 0x4, fixed_abs, tag = 'smem constant byte address 0x4 - core index']
  #allocation1 [shape = 'u32[144,128]{1,0:T(1,128)}', space=vmem, size = 0x12000, scoped, tag = 'internal scratch']
  %s0 = inlined_call_operand.vmem [shape: f32[10,65], index: 0, kind: input, shape index: {}]
  %s1 = inlined_call_operand.vmem [shape: f32[65,64], index: 1, kind: input, shape index: {}]
  %s2 = inlined_call_operand.vmem [shape: f32[1,64], index: 2, kind: input, shape index: {}]
  %s3 = inlined_call_operand.vmem [shape: f32[64,32], index: 3, kind: input, shape index: {}]
  %s4 = inlined_call_operand.vmem [shape: f32[1,32], index: 4, kind: input, shape index: {}]
  %s5 = inlined_call_operand.vmem [shape: f32[32,2], index: 5, kind: input, shape index: {}]
  %s6 = inlined_call_operand.vmem [shape: f32[1,2], index: 6, kind: input, shape index: {}]
  %s7 = inlined_call_operand.vmem [shape: f32[10,2], index: 7, kind: output, shape index: {}]
  %s8 = sld [smem:[#allocation0]]
  $region38: #{classifier_head.1} parent=0
    _
  %s10 = ssub.s32 1, %s8
  %s11 = scalar_select 0, %s10, %s8
  // Predicated region
  $region2: #{classifier_head.1} parent=0 // pred_check
    _
  $region3: #{classifier_head.1} parent=0 // pred_check_branch
    %13 = sbr.rel (0) target = $region5
  $region4: #{classifier_head.1} parent=0 // pred_region
    _
  $region5: #{classifier_head.1} parent=0 // pred_fallthru
    _
  // Predicated region
  $region6: #{classifier_head.1} parent=0 // pred_check
    _
  $region7: #{classifier_head.1} parent=0 // pred_check_branch
    %15 = sbr.rel (0) target = $region9
  $region8: #{classifier_head.1} parent=0 // pred_region
    _
  $region9: #{classifier_head.1} parent=0 // pred_fallthru
    _
  // Predicated region
  $region10: #{classifier_head.1} parent=0 // pred_check
    _
  $region11: #{classifier_head.1} parent=0 // pred_check_branch
    %17 = sbr.rel (0) target = $region13
  $region12: #{classifier_head.1} parent=0 // pred_region
    _
  $region13: #{classifier_head.1} parent=0 // pred_fallthru
    _
  // Predicated region
  $region14: #{classifier_head.1} parent=0 // pred_check
    _
  $region15: #{classifier_head.1} parent=0 // pred_check_branch
    %19 = sbr.rel (0) target = $region17
  $region16: #{classifier_head.1} parent=0 // pred_region
    _
  $region17: #{classifier_head.1} parent=0 // pred_fallthru
    _
  // Predicated region
  $region18: #{classifier_head.1} parent=0 // pred_check
    _
  $region19: #{classifier_head.1} parent=0 // pred_check_branch
    %21 = sbr.rel (0) target = $region21
  $region20: #{classifier_head.1} parent=0 // pred_region
    _
  $region21: #{classifier_head.1} parent=0 // pred_fallthru
    _
  // Predicated region
  $region22: #{classifier_head.1} parent=0 // pred_check
    _
  $region23: #{classifier_head.1} parent=0 // pred_check_branch
    %23 = sbr.rel (0) target = $region25
  $region24: #{classifier_head.1} parent=0 // pred_region
    _
  $region25: #{classifier_head.1} parent=0 // pred_fallthru
    _
  // Predicated region
  $region26: #{classifier_head.1} parent=0 // pred_check
    _
  $region27: #{classifier_head.1} parent=0 // pred_check_branch
    %25 = sbr.rel (0) target = $region29
  $region28: #{classifier_head.1} parent=0 // pred_region
    _
  $region29: #{classifier_head.1} parent=0 // pred_fallthru
    _
  %v26 = vld [vmem:[%s0] sm:$0xff]
  %v27 = vld [vmem:[%s0 + $0x8] sm:$0xff]
  %v28 = vld [vmem:[%s1] sm:$0xff]
  %v29 = vld [vmem:[%s1 + $0x8] sm:$0xff]
  %v30 = vld [vmem:[%s1 + $0x10] sm:$0xff]
  %v31 = vld [vmem:[%s1 + $0x18] sm:$0xff]
  %v32 = vld [vmem:[%s1 + $0x20] sm:$0xff]
  %v33 = vld [vmem:[%s1 + $0x28] sm:$0xff]
  %v34 = vld [vmem:[%s1 + $0x30] sm:$0xff]
  %v35 = vld [vmem:[%s1 + $0x38] sm:$0xff]
  %v36 = vld [vmem:[%s1 + $0x40] sm:$0x1]
  %v37 = vld [vmem:[%s2] sm:$0x1]
  %v39 = vlaneseq
  %v40 = vshrl.u32 %v39, 7
  %v41 = vsub.s32 0, %v40
  %v42 = vrot.slane %v37, %v41
  %vm44 = vcmask 531456
  %v46 = vsel %vm44, %v26, 0
  %v49 = vsel %vm44, %v27, 0
  %vm51 = vcmask 1040384
  %v53 = vsel %vm51, %v36, 0
  %55 = vmatprep.subr.mxu0 0.0
  %56 = vmatpush1.msra.mxu0 0.0
  %57 = vmatprep.subr.mxu0 0.0
  %58 = vmatpush1.msra.mxu0 0.0
  %59 = vmatprep.subr.mxu0 0.0
  %60 = vmatpush1.msra.mxu0 0.0
  %61 = vmatprep.subr.mxu0 0.0
  %62 = vmatpush1.msra.mxu0 0.0
  %63 = vmatprep.subr.mxu0 0.0
  %64 = vmatpush1.msra.mxu0 0.0
  %65 = vmatprep.subr.mxu0 0.0
  %66 = vmatpush1.msra.mxu0 0.0
  %67 = vmatprep.subr.mxu0 0.0
  %68 = vmatpush1.msra.mxu0 0.0
  %69 = vmatprep.subr.mxu0 0.0
  %70 = vmatpush1.msra.mxu0 %v53
  %71 = vmatprep.subr.mxu0 0.0
  %72 = vmatpush1.msra.mxu0 %v35
  %73 = vmatprep.subr.mxu0 0.0
  %74 = vmatpush1.msra.mxu0 %v34
  %75 = vmatprep.subr.mxu0 0.0
  %76 = vmatpush1.msra.mxu0 %v33
  %77 = vmatprep.subr.mxu0 0.0
  %78 = vmatpush1.msra.mxu0 %v32
  %79 = vmatprep.subr.mxu0 0.0
  %80 = vmatpush1.msra.mxu0 %v31
  %81 = vmatprep.subr.mxu0 0.0
  %82 = vmatpush1.msra.mxu0 %v30
  %83 = vmatprep.subr.mxu0 0.0
  %84 = vmatpush1.msra.mxu0 %v29
  %85 = vmatprep.subr.mxu0 0.0
  %86 = vmatpush1.msra.mxu0 %v28
  %87 = vmatprep.subr.mxu0 0.0
  %88 = vmatpush2.msra.mxu0 0.0
  %89 = vmatprep.subr.mxu0 0.0
  %90 = vmatpush2.msra.mxu0 0.0
  %91 = vmatprep.subr.mxu0 0.0
  %92 = vmatpush2.msra.mxu0 0.0
  %93 = vmatprep.subr.mxu0 0.0
  %94 = vmatpush2.msra.mxu0 0.0
  %95 = vmatprep.subr.mxu0 0.0
  %96 = vmatpush2.msra.mxu0 0.0
  %97 = vmatprep.subr.mxu0 0.0
  %98 = vmatpush2.msra.mxu0 0.0
  %99 = vmatprep.subr.mxu0 0.0
  %100 = vmatpush2.msra.mxu0 0.0
  %101 = vmatprep.subr.mxu0 0.0
  %102 = vmatpush2.msra.mxu0 0.0
  %103 = vmatprep.subr.mxu0 0.0
  %104 = vmatpush2.msra.mxu0 0.0
  %105 = vmatprep.subr.mxu0 0.0
  %106 = vmatpush2.msra.mxu0 0.0
  %107 = vmatprep.subr.mxu0 0.0
  %108 = vmatpush2.msra.mxu0 0.0
  %109 = vmatprep.subr.mxu0 0.0
  %110 = vmatpush2.msra.mxu0 0.0
  %111 = vmatprep.subr.mxu0 0.0
  %112 = vmatpush2.msra.mxu0 0.0
  %113 = vmatprep.subr.mxu0 0.0
  %114 = vmatpush2.msra.mxu0 0.0
  %115 = vmatprep.subr.mxu0 0.0
  %116 = vmatpush2.msra.mxu0 0.0
  %117 = vmatprep.subr.mxu0 0.0
  %118 = vmatpush2.msra.mxu0 0.0
  %119 = vmatprep.mubr.f32.mxu0 0.0
  %120 = vmatmul.mubr.f32.gmra.mxu0 %v46
  %v121 = vpop.f32.mrf.mxu0
  %v122 = vadd.f32 %v42, %v121
  %v123 = vpop.f32.mrf.mxu0
  %124 = vmatprep.mubr.f32.mxu0 0.0
  %125 = vmatmul.mubr.f32.gmra.mxu0 %v49
  %v126 = vpop.f32.mrf.mxu0
  %v127 = vadd.f32 %v42, %v126
  %v128 = vpop.f32.mrf.mxu0
  %129 = vdwg.mxu0
  %v130 = vmax.f32 %v122, 0.0
  %v131 = vmax.f32 %v127, 0.0
  %v132 = vld [vmem:[%s3] sm:$0xff]
  %v133 = vld [vmem:[%s3 + $0x8] sm:$0xff]
  %v134 = vld [vmem:[%s3 + $0x10] sm:$0xff]
  %v135 = vld [vmem:[%s3 + $0x18] sm:$0xff]
  %v136 = vld [vmem:[%s3 + $0x20] sm:$0xff]
  %v137 = vld [vmem:[%s3 + $0x28] sm:$0xff]
  %v138 = vld [vmem:[%s3 + $0x30] sm:$0xff]
  %v139 = vld [vmem:[%s3 + $0x38] sm:$0xff]
  %v140 = vld [vmem:[%s4] sm:$0x1]
  %v142 = vlaneseq
  %v143 = vshrl.u32 %v142, 7
  %v144 = vsub.s32 0, %v143
  %v145 = vrot.slane %v140, %v144
  %vm147 = vcmask 523264
  %v149 = vsel %vm147, %v130, 0
  %v152 = vsel %vm147, %v131, 0
  %154 = vmatprep.subr.mxu0 0.0
  %155 = vmatpush1.msra.mxu0 0.0
  %156 = vmatprep.subr.mxu0 0.0
  %157 = vmatpush1.msra.mxu0 0.0
  %158 = vmatprep.subr.mxu0 0.0
  %159 = vmatpush1.msra.mxu0 0.0
  %160 = vmatprep.subr.mxu0 0.0
  %161 = vmatpush1.msra.mxu0 0.0
  %162 = vmatprep.subr.mxu0 0.0
  %163 = vmatpush1.msra.mxu0 0.0
  %164 = vmatprep.subr.mxu0 0.0
  %165 = vmatpush1.msra.mxu0 0.0
  %166 = vmatprep.subr.mxu0 0.0
  %167 = vmatpush1.msra.mxu0 0.0
  %168 = vmatprep.subr.mxu0 0.0
  %169 = vmatpush1.msra.mxu0 0.0
  %170 = vmatprep.subr.mxu0 0.0
  %171 = vmatpush1.msra.mxu0 %v139
  %172 = vmatprep.subr.mxu0 0.0
  %173 = vmatpush1.msra.mxu0 %v138
  %174 = vmatprep.subr.mxu0 0.0
  %175 = vmatpush1.msra.mxu0 %v137
  %176 = vmatprep.subr.mxu0 0.0
  %177 = vmatpush1.msra.mxu0 %v136
  %178 = vmatprep.subr.mxu0 0.0
  %179 = vmatpush1.msra.mxu0 %v135
  %180 = vmatprep.subr.mxu0 0.0
  %181 = vmatpush1.msra.mxu0 %v134
  %182 = vmatprep.subr.mxu0 0.0
  %183 = vmatpush1.msra.mxu0 %v133
  %184 = vmatprep.subr.mxu0 0.0
  %185 = vmatpush1.msra.mxu0 %v132
  %186 = vmatprep.subr.mxu0 0.0
  %187 = vmatpush2.msra.mxu0 0.0
  %188 = vmatprep.subr.mxu0 0.0
  %189 = vmatpush2.msra.mxu0 0.0
  %190 = vmatprep.subr.mxu0 0.0
  %191 = vmatpush2.msra.mxu0 0.0
  %192 = vmatprep.subr.mxu0 0.0
  %193 = vmatpush2.msra.mxu0 0.0
  %194 = vmatprep.subr.mxu0 0.0
  %195 = vmatpush2.msra.mxu0 0.0
  %196 = vmatprep.subr.mxu0 0.0
  %197 = vmatpush2.msra.mxu0 0.0
  %198 = vmatprep.subr.mxu0 0.0
  %199 = vmatpush2.msra.mxu0 0.0
  %200 = vmatprep.subr.mxu0 0.0
  %201 = vmatpush2.msra.mxu0 0.0
  %202 = vmatprep.subr.mxu0 0.0
  %203 = vmatpush2.msra.mxu0 0.0
  %204 = vmatprep.subr.mxu0 0.0
  %205 = vmatpush2.msra.mxu0 0.0
  %206 = vmatprep.subr.mxu0 0.0
  %207 = vmatpush2.msra.mxu0 0.0
  %208 = vmatprep.subr.mxu0 0.0
  %209 = vmatpush2.msra.mxu0 0.0
  %210 = vmatprep.subr.mxu0 0.0
  %211 = vmatpush2.msra.mxu0 0.0
  %212 = vmatprep.subr.mxu0 0.0
  %213 = vmatpush2.msra.mxu0 0.0
  %214 = vmatprep.subr.mxu0 0.0
  %215 = vmatpush2.msra.mxu0 0.0
  %216 = vmatprep.subr.mxu0 0.0
  %217 = vmatpush2.msra.mxu0 0.0
  %218 = vmatprep.mubr.f32.mxu0 0.0
  %219 = vmatmul.mubr.f32.gmra.mxu0 %v149
  %v220 = vpop.f32.mrf.mxu0
  %v221 = vadd.f32 %v145, %v220
  %v222 = vpop.f32.mrf.mxu0
  %223 = vmatprep.mubr.f32.mxu0 0.0
  %224 = vmatmul.mubr.f32.gmra.mxu0 %v152
  %v225 = vpop.f32.mrf.mxu0
  %v226 = vadd.f32 %v145, %v225
  %v227 = vpop.f32.mrf.mxu0
  %228 = vdwg.mxu0
  %v229 = vmax.f32 %v221, 0.0
  %v230 = vmax.f32 %v226, 0.0
  %v231 = vld [vmem:[%s5] sm:$0xff]
  %v232 = vld [vmem:[%s5 + $0x8] sm:$0xff]
  %v233 = vld [vmem:[%s5 + $0x10] sm:$0xff]
  %v234 = vld [vmem:[%s5 + $0x18] sm:$0xff]
  %v235 = vld [vmem:[%s6] sm:$0x1]
  %v237 = vlaneseq
  %v238 = vshrl.u32 %v237, 7
  %v239 = vsub.s32 0, %v238
  %v240 = vrot.slane %v235, %v239
  %vm242 = vcmask 261120
  %v244 = vsel %vm242, %v229, 0
  %v247 = vsel %vm242, %v230, 0
  %249 = vmatprep.subr.mxu0 0.0
  %250 = vmatpush1.msra.mxu0 0.0
  %251 = vmatprep.subr.mxu0 0.0
  %252 = vmatpush1.msra.mxu0 0.0
  %253 = vmatprep.subr.mxu0 0.0
  %254 = vmatpush1.msra.mxu0 0.0
  %255 = vmatprep.subr.mxu0 0.0
  %256 = vmatpush1.msra.mxu0 0.0
  %257 = vmatprep.subr.mxu0 0.0
  %258 = vmatpush1.msra.mxu0 0.0
  %259 = vmatprep.subr.mxu0 0.0
  %260 = vmatpush1.msra.mxu0 0.0
  %261 = vmatprep.subr.mxu0 0.0
  %262 = vmatpush1.msra.mxu0 0.0
  %263 = vmatprep.subr.mxu0 0.0
  %264 = vmatpush1.msra.mxu0 0.0
  %265 = vmatprep.subr.mxu0 0.0
  %266 = vmatpush1.msra.mxu0 0.0
  %267 = vmatprep.subr.mxu0 0.0
  %268 = vmatpush1.msra.mxu0 0.0
  %269 = vmatprep.subr.mxu0 0.0
  %270 = vmatpush1.msra.mxu0 0.0
  %271 = vmatprep.subr.mxu0 0.0
  %272 = vmatpush1.msra.mxu0 0.0
  %273 = vmatprep.subr.mxu0 0.0
  %274 = vmatpush1.msra.mxu0 %v234
  %275 = vmatprep.subr.mxu0 0.0
  %276 = vmatpush1.msra.mxu0 %v233
  %277 = vmatprep.subr.mxu0 0.0
  %278 = vmatpush1.msra.mxu0 %v232
  %279 = vmatprep.subr.mxu0 0.0
  %280 = vmatpush1.msra.mxu0 %v231
  %281 = vmatprep.subr.mxu0 0.0
  %282 = vmatpush2.msra.mxu0 0.0
  %283 = vmatprep.subr.mxu0 0.0
  %284 = vmatpush2.msra.mxu0 0.0
  %285 = vmatprep.subr.mxu0 0.0
  %286 = vmatpush2.msra.mxu0 0.0
  %287 = vmatprep.subr.mxu0 0.0
  %288 = vmatpush2.msra.mxu0 0.0
  %289 = vmatprep.subr.mxu0 0.0
  %290 = vmatpush2.msra.mxu0 0.0
  %291 = vmatprep.subr.mxu0 0.0
  %292 = vmatpush2.msra.mxu0 0.0
  %293 = vmatprep.subr.mxu0 0.0
  %294 = vmatpush2.msra.mxu0 0.0
  %295 = vmatprep.subr.mxu0 0.0
  %296 = vmatpush2.msra.mxu0 0.0
  %297 = vmatprep.subr.mxu0 0.0
  %298 = vmatpush2.msra.mxu0 0.0
  %299 = vmatprep.subr.mxu0 0.0
  %300 = vmatpush2.msra.mxu0 0.0
  %301 = vmatprep.subr.mxu0 0.0
  %302 = vmatpush2.msra.mxu0 0.0
  %303 = vmatprep.subr.mxu0 0.0
  %304 = vmatpush2.msra.mxu0 0.0
  %305 = vmatprep.subr.mxu0 0.0
  %306 = vmatpush2.msra.mxu0 0.0
  %307 = vmatprep.subr.mxu0 0.0
  %308 = vmatpush2.msra.mxu0 0.0
  %309 = vmatprep.subr.mxu0 0.0
  %310 = vmatpush2.msra.mxu0 0.0
  %311 = vmatprep.subr.mxu0 0.0
  %312 = vmatpush2.msra.mxu0 0.0
  %313 = vmatprep.mubr.f32.mxu0 0.0
  %314 = vmatmul.mubr.f32.gmra.mxu0 %v244
  %v315 = vpop.f32.mrf.mxu0
  %v316 = vadd.f32 %v240, %v315
  %v317 = vpop.f32.mrf.mxu0
  %318 = vmatprep.mubr.f32.mxu0 0.0
  %319 = vmatmul.mubr.f32.gmra.mxu0 %v247
  %v320 = vpop.f32.mrf.mxu0
  %v321 = vadd.f32 %v240, %v320
  %v322 = vpop.f32.mrf.mxu0
  %323 = vdwg.mxu0
  %vm324 = vcmask 15360
  %325 = vst.msk [vmem:[%s7] sm:$0xff] %vm324, %v316
  %326 = vst.msk [vmem:[%s7 + $0x8] sm:$0xff] %vm324, %v321
  // Predicated region
  $region30: #{classifier_head.1} parent=0 // pred_check
    _
  $region31: #{classifier_head.1} parent=0 // pred_check_branch
    %328 = sbr.rel (0) target = $region33
  $region32: #{classifier_head.1} parent=0 // pred_region
    _
  $region33: #{classifier_head.1} parent=0 // pred_fallthru
    _
  // Predicated region
  $region34: #{classifier_head.1} parent=0 // pred_check
    _
  $region35: #{classifier_head.1} parent=0 // pred_check_branch
    %330 = sbr.rel (0) target = $region37
  $region36: #{classifier_head.1} parent=0 // pred_region
    _
  $region37: #{classifier_head.1} parent=0 // pred_fallthru
    _

</llo_original>
